<compile_context>
chip_gen: v6e
topology: v6e:2x2x1
jax: 0.10.0
libtpu: 0.0.40
codegen_flags: <defaults>
</compile_context>

<pallas_src>
import functools

import jax
import jax.numpy as jnp
from jax.experimental import pallas as pl
from jax.experimental.pallas import tpu as pltpu

EPS = 1e-8
_MIB = 1024 * 1024


def _round_up(x, m):
    return ((x + m - 1) // m) * m


def _vmem_cap_bytes():
    """Generation-aware VMEM budget (~75% of physical per-core capacity)."""
    try:
        phys = int(pltpu.get_tpu_info().vmem_capacity_bytes)
    except Exception:
        phys = 64 * _MIB  # conservative (v7x per-TC) fallback
    return int(phys * 3 // 4)


def _encoder_kernel(scale_ref, x_ref, w_ref, b_ref, o_ref, acc_ref, *, no_imgnorm):
    """(tm, tk) @ (tk, n_pad) MXU step + fused scale/bias/L2-norm epilogue."""
    k = pl.program_id(1)

    @pl.when(k == 0)
    def _init():
        acc_ref[...] = jnp.zeros_like(acc_ref)

    acc_ref[...] += jnp.dot(x_ref[...], w_ref[...],
                            preferred_element_type=jnp.float32)

    @pl.when(k == pl.num_programs(1) - 1)
    def _epilogue():
        feats = acc_ref[...] * scale_ref[0, 0] + b_ref[...]          # f32
        if not no_imgnorm:
            # l2norm: x / (sqrt(sum(x^2, -1)) + eps). Padded zero columns
            # contribute nothing to the norm.
            sq = jnp.sum(feats * feats, axis=-1, keepdims=True)
            norm = jnp.sqrt(sq) + EPS
            feats = feats * pl.reciprocal(norm, approx=False)         # EUP
        o_ref[...] = feats.astype(o_ref.dtype)


def prepare_encoder_params(weight_v, weight_g, bias, *, compute_dtype=None):
    """One-time (init-time) relayout of the weight-norm Linear parameters.

    Hoisted out of the per-forward hot path: transpose V to (K, N), pad N to a
    lane-dense multiple of 128, fold weight_norm(dim=None) into one scalar.
    """
    embed_size, img_dim = weight_v.shape
    n_pad = _round_up(embed_size, 128)
    if compute_dtype is None:
        compute_dtype = weight_v.dtype
    compute_dtype = jnp.dtype(compute_dtype)

    v32 = weight_v.astype(jnp.float32)
    v_norm = jnp.sqrt(jnp.sum(jnp.square(v32)))
    scale = (jnp.asarray(weight_g, jnp.float32).reshape(()) / v_norm).reshape(1, 1)

    w_t = jnp.transpose(weight_v).astype(compute_dtype)        # (K, N) unscaled V^T
    b2d = bias.astype(jnp.float32).reshape(1, embed_size)
    if n_pad != embed_size:
        w_t = jnp.pad(w_t, ((0, 0), (0, n_pad - embed_size)))
        b2d = jnp.pad(b2d, ((0, 0), (0, n_pad - embed_size)))

    return dict(scale=scale, w_t=w_t, b2d=b2d, img_dim=img_dim,
                embed_size=embed_size, n_pad=n_pad, compute_dtype=compute_dtype)


def encoder_image_apply(images, params, *, no_imgnorm=False, tm=512):
    """Hot path: images (..., img_dim) -> (..., embed_size)."""
    img_dim = params["img_dim"]
    embed_size = params["embed_size"]
    n_pad = params["n_pad"]
    compute_dtype = params["compute_dtype"]
    scale, w_t, b2d = params["scale"], params["w_t"], params["b2d"]

    assert images.shape[-1] == img_dim
    lead_shape = images.shape[:-1]
    out_dtype = images.dtype

    x2d = images.reshape(-1, img_dim)
    if x2d.dtype != compute_dtype:
        x2d = x2d.astype(compute_dtype)
    M, K = x2d.shape

    cap = _vmem_cap_bytes()
    x_it = jnp.dtype(compute_dtype).itemsize
    out_it = jnp.dtype(out_dtype).itemsize

    # ---- K tiling: keep one weight block within ~1/3 of the VMEM budget ----
    tk = K
    if K * n_pad * x_it > cap // 3:
        for cand in (4096, 2048, 1024, 512, 256, 128):
            if K % cand == 0:
                tk = cand
                if cand * n_pad * x_it <= cap // 3:
                    break
        # If no multiple-of-128 divisor exists, tk stays == K (see TODO above).
    grid_k = K // tk if (K % tk == 0) else 1
    if grid_k * tk != K:
        tk, grid_k = K, 1

    # ---- M tiling ----
    def _vmem_needed(tm_, w_bufs):
        return (2 * tm_ * tk * x_it                 # x tile, double buffered
                + w_bufs * tk * n_pad * x_it        # weight tile
                + n_pad * 4                         # bias
                + 2 * tm_ * n_pad * out_it          # output tile, double buffered
                + tm_ * n_pad * 4)                  # f32 accumulator scratch

    w_bufs = 1 if grid_k == 1 else 2
    headroom = 4 * _MIB
    tm = max(8, min(tm, _round_up(M, 8)))
    while tm > 8 and _vmem_needed(tm, w_bufs) > cap - headroom:
        tm = max(8, _round_up(tm // 2, 8))
    # Guarantee >= 2 row blocks for medium batches so the "parallel" M axis
    # can shard across both TensorCores on v7x.
    if M > 8 and pl.cdiv(M, tm) < 2:
        tm = max(8, _round_up(pl.cdiv(M, 2), 8))
    grid_m = pl.cdiv(M, tm)

    # vmem_limit: intended layout + slack that also covers the fallback path
    # where the invariant weight ends up default double-buffered.
    vmem_limit = int(min(cap, max(8 * _MIB,
                                  _vmem_needed(tm, w_bufs)
                                  + tk * n_pad * x_it + headroom)))

    cost = pl.CostEstimate(
        flops=2 * M * K * n_pad,
        transcendentals=0 if no_imgnorm else 2 * M,     # sqrt + reciprocal per row
        bytes_accessed=(M * K * x_it + K * n_pad * x_it + n_pad * 4
                        + M * n_pad * out_it),
    )

    kernel = functools.partial(_encoder_kernel, no_imgnorm=no_imgnorm)

    def _run(single_buffer_invariants):
        if grid_k == 1:
            w_idx = lambda i, k: (0, 0)
        else:
            w_idx = lambda i, k: (k, 0)
        if single_buffer_invariants:
            b_spec = pl.BlockSpec((1, n_pad), lambda i, k: (0, 0),
                                  pipeline_mode=pl.Buffered(1))
            if grid_k == 1:
                w_spec = pl.BlockSpec((tk, n_pad), w_idx,
                                      pipeline_mode=pl.Buffered(1))
            else:
                w_spec = pl.BlockSpec((tk, n_pad), w_idx)
        else:
            b_spec = pl.BlockSpec((1, n_pad), lambda i, k: (0, 0))
            w_spec = pl.BlockSpec((tk, n_pad), w_idx)

        return pl.pallas_call(
            kernel,
            out_shape=jax.ShapeDtypeStruct((M, n_pad), out_dtype),
            grid_spec=pltpu.PrefetchScalarGridSpec(
                num_scalar_prefetch=0,
                grid=(grid_m, grid_k),
                in_specs=[
                    pl.BlockSpec(memory_space=pltpu.MemorySpace.SMEM),  # scale (1,1)
                    pl.BlockSpec((tm, tk), lambda i, k: (i, k)),        # x row tile
                    w_spec,                                             # V^T tile
                    b_spec,                                             # bias
                ],
                out_specs=pl.BlockSpec((tm, n_pad), lambda i, k: (i, 0)),
                scratch_shapes=[pltpu.VMEM((tm, n_pad), jnp.float32)],
            ),
            compiler_params=pltpu.CompilerParams(
                dimension_semantics=("parallel", "arbitrary"),
                vmem_limit_bytes=vmem_limit,
            ),
            cost_estimate=cost,
        )(scale, x2d, w_t, b2d)

    try:
        out = _run(True)
    except Exception:
        # pipeline_mode=pl.Buffered not supported by this jax build: fall back
        # to default double-buffering (identical numerics, slightly more VMEM).
        out = _run(False)

    if n_pad != embed_size:
        # Only happens when embed_size is not a multiple of 128; typical sizes
        # (512/1024/2048) skip both the padding and this slice-copy entirely.
        out = out[:, :embed_size]
    return out.reshape(*lead_shape, embed_size)


def encoder_image_weightnorm_precomp(images, weight_v, weight_g, bias, *,
                                     no_imgnorm=False, tm=512, bf16_matmul=None):
    """Stateless convenience wrapper (prepare + apply).

    bf16_matmul: None -> bf16 operands only if images are bf16; True forces
    bf16 MXU operands for f32 callers (f32 accumulation/epilogue kept).
    Real callers should invoke prepare_encoder_params() once at init time.
    """
    if bf16_matmul is None:
        bf16_matmul = (images.dtype == jnp.bfloat16)
    compute_dtype = jnp.bfloat16 if bf16_matmul else images.dtype
    params = prepare_encoder_params(weight_v, weight_g, bias,
                                    compute_dtype=compute_dtype)
    return encoder_image_apply(images, params, no_imgnorm=no_imgnorm, tm=tm)


def _reference(images, weight_v, weight_g, bias, no_imgnorm=False):
    v_norm = jnp.sqrt(jnp.sum(weight_v ** 2))
    w = (weight_g / v_norm) * weight_v
    feats = images @ w.T + bias
    if not no_imgnorm:
        norm = jnp.sqrt(jnp.sum(feats ** 2, axis=-1, keepdims=True)) + EPS
        feats = feats / norm
    return feats


if __name__ == "__main__":
    key = jax.random.PRNGKey(0)
    k_img, k_v, k_b = jax.random.split(key, 3)

    batch, n_regions, img_dim, embed_size = 2, 8, 32, 32

    images = jax.random.normal(k_img, (batch, n_regions, img_dim), jnp.float32)

    # Deterministic parameter init mimicking nn.Linear defaults.
    bound = 1.0 / (img_dim ** 0.5)
    weight_v = jax.random.uniform(k_v, (embed_size, img_dim), jnp.float32,
                                  -bound, bound)
    bias = jax.random.uniform(k_b, (embed_size,), jnp.float32, -bound, bound)
    # weight_norm init: g = ||v||_F (so effective weight == v initially).
    weight_g = jnp.sqrt(jnp.sum(weight_v ** 2))

    out = encoder_image_weightnorm_precomp(images, weight_v, weight_g, bias,
                                           no_imgnorm=False)
    out = jax.block_until_ready(out)

    ref = _reference(images, weight_v, weight_g, bias, no_imgnorm=False)
    assert out.shape == (batch, n_regions, embed_size)
    assert jnp.allclose(out, ref, atol=1e-5, rtol=1e-4), "mismatch vs reference"

    print("KERNEL_OK")
</pallas_src>

<mosaic_0001>
module attributes {stable_mosaic.version = 11 : i64} {
  func.func @_encoder_kernel(%arg0: i32, %arg1: i32, %arg2: memref<1x1xf32, #tpu.memory_space<smem>>, %arg3: memref<8x32xf32, #tpu.memory_space<vmem>>, %arg4: memref<32x128xf32, #tpu.memory_space<vmem>>, %arg5: memref<1x128xf32, #tpu.memory_space<vmem>>, %arg6: memref<8x128xf32, #tpu.memory_space<vmem>>, %arg7: memref<8x128xf32, #tpu.memory_space<vmem>>) attributes {dimension_semantics = [#tpu.dimension_semantics<parallel>, #tpu.dimension_semantics<arbitrary>], iteration_bounds = array<i64: 2, 1>, scalar_prefetch = 0 : i64, scratch_operands = 1 : i64, tpu.core_type = #tpu.core_type<tc>, window_params = [{transform_indices = @transform_0, window_bounds = array<i64: 1, 1>}, {transform_indices = @transform_1, window_bounds = array<i64: 8, 32>}, {pipeline_mode = #tpu.pipeline_mode<synchronous>, transform_indices = @transform_2, window_bounds = array<i64: 32, 128>}, {pipeline_mode = #tpu.pipeline_mode<synchronous>, transform_indices = @transform_3, window_bounds = array<i64: 1, 128>}, {transform_indices = @transform_4, window_bounds = array<i64: 8, 128>}]} {
    %c0_i32 = arith.constant 0 : i32
    %0 = arith.cmpi eq, %arg1, %c0_i32 : i32
    %1 = arith.extui %0 : i1 to i32
    %c0_i32_0 = arith.constant 0 : i32
    %2 = arith.cmpi ne, %1, %c0_i32_0 : i32
    scf.if %2 {
      %cst_10 = arith.constant 0.000000e+00 : f32
      %12 = vector.broadcast %cst_10 : f32 to vector<8x128xf32>
      %c0_11 = arith.constant 0 : index
      %c0_12 = arith.constant 0 : index
      %13 = vector.load %arg7[%c0_11, %c0_12] : memref<8x128xf32, #tpu.memory_space<vmem>>, vector<8x128xf32>
      tpu.vector_store %arg7[%c0_11, %c0_12], %12 {strides = array<i32>} : memref<8x128xf32, #tpu.memory_space<vmem>>, vector<8x128xf32>,
    } else {
    }
    %c0 = arith.constant 0 : index
    %c0_1 = arith.constant 0 : index
    %3 = vector.load %arg7[%c0, %c0_1] : memref<8x128xf32, #tpu.memory_space<vmem>>, vector<8x128xf32>
    %c0_2 = arith.constant 0 : index
    %c0_3 = arith.constant 0 : index
    %4 = vector.load %arg3[%c0_2, %c0_3] : memref<8x32xf32, #tpu.memory_space<vmem>>, vector<8x32xf32>
    %c0_4 = arith.constant 0 : index
    %c0_5 = arith.constant 0 : index
    %5 = vector.load %arg4[%c0_4, %c0_5] : memref<32x128xf32, #tpu.memory_space<vmem>>, vector<32x128xf32>
    %cst = arith.constant dense<0.000000e+00> : vector<8x128xf32>
    %6 = tpu.matmul %4, %5, %cst {dimension_numbers = #tpu.dot_dimension_numbers<[1], [0], [0], [1], [0, 0, 1, 1], [], []>} : vector<8x32xf32>, vector<32x128xf32>, vector<8x128xf32> -> vector<8x128xf32>
    %7 = arith.addf %3, %6 : vector<8x128xf32>
    %c0_6 = arith.constant 0 : index
    %c0_7 = arith.constant 0 : index
    %8 = vector.load %arg7[%c0_6, %c0_7] : memref<8x128xf32, #tpu.memory_space<vmem>>, vector<8x128xf32>
    tpu.vector_store %arg7[%c0_6, %c0_7], %7 {strides = array<i32>} : memref<8x128xf32, #tpu.memory_space<vmem>>, vector<8x128xf32>,
    %c0_i32_8 = arith.constant 0 : i32
    %9 = arith.cmpi eq, %arg1, %c0_i32_8 : i32
    %10 = arith.extui %9 : i1 to i32
    %c0_i32_9 = arith.constant 0 : i32
    %11 = arith.cmpi ne, %10, %c0_i32_9 : i32
    scf.if %11 {
      %c0_10 = arith.constant 0 : index
      %c0_11 = arith.constant 0 : index
      %12 = vector.load %arg7[%c0_10, %c0_11] : memref<8x128xf32, #tpu.memory_space<vmem>>, vector<8x128xf32>
      %c0_12 = arith.constant 0 : index
      %c0_13 = arith.constant 0 : index
      %13 = memref.load %arg2[%c0_12, %c0_13] : memref<1x1xf32, #tpu.memory_space<smem>>
      %14 = vector.broadcast %13 : f32 to vector<8x128xf32>
      %15 = arith.mulf %12, %14 : vector<8x128xf32>
      %c0_14 = arith.constant 0 : index
      %c0_15 = arith.constant 0 : index
      %16 = vector.load %arg5[%c0_14, %c0_15] : memref<1x128xf32, #tpu.memory_space<vmem>>, vector<1x128xf32>
      %17 = vector.broadcast %16 : vector<1x128xf32> to vector<8x128xf32>
      %18 = arith.addf %15, %17 : vector<8x128xf32>
      %19 = arith.mulf %18, %18 : vector<8x128xf32>
      %cst_16 = arith.constant dense<0.000000e+00> : vector<8xf32>
      %20 = vector.multi_reduction <add>, %19, %cst_16 [1] : vector<8x128xf32> to vector<8xf32>
      %21 = vector.shape_cast %20 : vector<8xf32> to vector<8x1xf32>
      %22 = math.sqrt %21 : vector<8x1xf32>
      %cst_17 = arith.constant 9.99999993E-9 : f32
      %23 = vector.broadcast %cst_17 : f32 to vector<8x1xf32>
      %24 = arith.addf %22, %23 : vector<8x1xf32>
      %25 = tpu.reciprocal %24 : vector<8x1xf32> -> vector<8x1xf32>
      %26 = vector.broadcast %25 : vector<8x1xf32> to vector<8x128xf32>
      %27 = arith.mulf %18, %26 : vector<8x128xf32>
      %c0_18 = arith.constant 0 : index
      %c0_19 = arith.constant 0 : index
      %28 = vector.load %arg6[%c0_18, %c0_19] : memref<8x128xf32, #tpu.memory_space<vmem>>, vector<8x128xf32>
      tpu.vector_store %arg6[%c0_18, %c0_19], %27 {strides = array<i32>} : memref<8x128xf32, #tpu.memory_space<vmem>>, vector<8x128xf32>,
    } else {
    }
    return
  }
  func.func @transform_0(%arg0: i32, %arg1: i32) -> (i32, i32) {
    %c0_i32 = arith.constant 0 : i32
    %c0_i32_0 = arith.constant 0 : i32
    %c0_i32_1 = arith.constant 0 : i32
    return %c0_i32, %c0_i32_0 : i32, i32
  }
  func.func @transform_1(%arg0: i32, %arg1: i32) -> (i32, i32) {
    %c0_i32 = arith.constant 0 : i32
    return %arg0, %arg1 : i32, i32
  }
  func.func @transform_2(%arg0: i32, %arg1: i32) -> (i32, i32) {
    %c0_i32 = arith.constant 0 : i32
    %c0_i32_0 = arith.constant 0 : i32
    %c0_i32_1 = arith.constant 0 : i32
    return %c0_i32, %c0_i32_0 : i32, i32
  }
  func.func @transform_3(%arg0: i32, %arg1: i32) -> (i32, i32) {
    %c0_i32 = arith.constant 0 : i32
    %c0_i32_0 = arith.constant 0 : i32
    %c0_i32_1 = arith.constant 0 : i32
    return %c0_i32, %c0_i32_0 : i32, i32
  }
  func.func @transform_4(%arg0: i32, %arg1: i32) -> (i32, i32) {
    %c0_i32 = arith.constant 0 : i32
    %c0_i32_0 = arith.constant 0 : i32
    return %arg0, %c0_i32 : i32, i32
  }
}

module attributes {stable_mosaic.version = 11 : i64} {
  func.func @_encoder_kernel(%arg0: i32, %arg1: i32, %arg2: memref<1x1xf32, #tpu.memory_space<smem>>, %arg3: memref<8x32xf32, #tpu.memory_space<vmem>>, %arg4: memref<32x128xf32, #tpu.memory_space<vmem>>, %arg5: memref<1x128xf32, #tpu.memory_space<vmem>>, %arg6: memref<8x128xf32, #tpu.memory_space<vmem>>, %arg7: memref<8x128xf32, #tpu.memory_space<vmem>>) attributes {dimension_semantics = [#tpu.dimension_semantics<parallel>, #tpu.dimension_semantics<arbitrary>], iteration_bounds = array<i64: 2, 1>, scalar_prefetch = 0 : i64, scratch_operands = 1 : i64, tpu.core_type = #tpu.core_type<tc>, window_params = [{transform_indices = @transform_0, window_bounds = array<i64: 1, 1>}, {transform_indices = @transform_1, window_bounds = array<i64: 8, 32>}, {pipeline_mode = #tpu.pipeline_mode<synchronous>, transform_indices = @transform_2, window_bounds = array<i64: 32, 128>}, {pipeline_mode = #tpu.pipeline_mode<synchronous>, transform_indices = @transform_3, window_bounds = array<i64: 1, 128>}, {transform_indices = @transform_4, window_bounds = array<i64: 8, 128>}]} {
    %c0_i32 = arith.constant 0 : i32
    %0 = arith.cmpi eq, %arg1, %c0_i32 : i32
    %1 = arith.extui %0 : i1 to i32
    %c0_i32_0 = arith.constant 0 : i32
    %2 = arith.cmpi ne, %1, %c0_i32_0 : i32
    scf.if %2 {
      %cst_10 = arith.constant 0.000000e+00 : f32
      %12 = vector.broadcast %cst_10 : f32 to vector<8x128xf32>
      %c0_11 = arith.constant 0 : index
      %c0_12 = arith.constant 0 : index
      %13 = vector.load %arg7[%c0_11, %c0_12] : memref<8x128xf32, #tpu.memory_space<vmem>>, vector<8x128xf32>
      tpu.vector_store %arg7[%c0_11, %c0_12], %12 {strides = array<i32>} : memref<8x128xf32, #tpu.memory_space<vmem>>, vector<8x128xf32>,
    } else {
    }
    %c0 = arith.constant 0 : index
    %c0_1 = arith.constant 0 : index
    %3 = vector.load %arg7[%c0, %c0_1] : memref<8x128xf32, #tpu.memory_space<vmem>>, vector<8x128xf32>
    %c0_2 = arith.constant 0 : index
    %c0_3 = arith.constant 0 : index
    %4 = vector.load %arg3[%c0_2, %c0_3] : memref<8x32xf32, #tpu.memory_space<vmem>>, vector<8x32xf32>
    %c0_4 = arith.constant 0 : index
    %c0_5 = arith.constant 0 : index
    %5 = vector.load %arg4[%c0_4, %c0_5] : memref<32x128xf32, #tpu.memory_space<vmem>>, vector<32x128xf32>
    %cst = arith.constant dense<0.000000e+00> : vector<8x128xf32>
    %6 = tpu.matmul %4, %5, %cst {dimension_numbers = #tpu.dot_dimension_numbers<[1], [0], [0], [1], [0, 0, 1, 1], [], []>} : vector<8x32xf32>, vector<32x128xf32>, vector<8x128xf32> -> vector<8x128xf32>
    %7 = arith.addf %3, %6 : vector<8x128xf32>
    %c0_6 = arith.constant 0 : index
    %c0_7 = arith.constant 0 : index
    %8 = vector.load %arg7[%c0_6, %c0_7] : memref<8x128xf32, #tpu.memory_space<vmem>>, vector<8x128xf32>
    tpu.vector_store %arg7[%c0_6, %c0_7], %7 {strides = array<i32>} : memref<8x128xf32, #tpu.memory_space<vmem>>, vector<8x128xf32>,
    %c0_i32_8 = arith.constant 0 : i32
    %9 = arith.cmpi eq, %arg1, %c0_i32_8 : i32
    %10 = arith.extui %9 : i1 to i32
    %c0_i32_9 = arith.constant 0 : i32
    %11 = arith.cmpi ne, %10, %c0_i32_9 : i32
    scf.if %11 {
      %c0_10 = arith.constant 0 : index
      %c0_11 = arith.constant 0 : index
      %12 = vector.load %arg7[%c0_10, %c0_11] : memref<8x128xf32, #tpu.memory_space<vmem>>, vector<8x128xf32>
      %c0_12 = arith.constant 0 : index
      %c0_13 = arith.constant 0 : index
      %13 = memref.load %arg2[%c0_12, %c0_13] : memref<1x1xf32, #tpu.memory_space<smem>>
      %14 = vector.broadcast %13 : f32 to vector<8x128xf32>
      %15 = arith.mulf %12, %14 : vector<8x128xf32>
      %c0_14 = arith.constant 0 : index
      %c0_15 = arith.constant 0 : index
      %16 = vector.load %arg5[%c0_14, %c0_15] : memref<1x128xf32, #tpu.memory_space<vmem>>, vector<1x128xf32>
      %17 = vector.broadcast %16 : vector<1x128xf32> to vector<8x128xf32>
      %18 = arith.addf %15, %17 : vector<8x128xf32>
      %19 = arith.mulf %18, %18 : vector<8x128xf32>
      %cst_16 = arith.constant dense<0.000000e+00> : vector<8xf32>
      %20 = vector.multi_reduction <add>, %19, %cst_16 [1] : vector<8x128xf32> to vector<8xf32>
      %21 = vector.shape_cast %20 : vector<8xf32> to vector<8x1xf32>
      %22 = math.sqrt %21 : vector<8x1xf32>
      %cst_17 = arith.constant 9.99999993E-9 : f32
      %23 = vector.broadcast %cst_17 : f32 to vector<8x1xf32>
      %24 = arith.addf %22, %23 : vector<8x1xf32>
      %25 = tpu.reciprocal %24 : vector<8x1xf32> -> vector<8x1xf32>
      %26 = vector.broadcast %25 : vector<8x1xf32> to vector<8x128xf32>
      %27 = arith.mulf %18, %26 : vector<8x128xf32>
      %c0_18 = arith.constant 0 : index
      %c0_19 = arith.constant 0 : index
      %28 = vector.load %arg6[%c0_18, %c0_19] : memref<8x128xf32, #tpu.memory_space<vmem>>, vector<8x128xf32>
      tpu.vector_store %arg6[%c0_18, %c0_19], %27 {strides = array<i32>} : memref<8x128xf32, #tpu.memory_space<vmem>>, vector<8x128xf32>,
    } else {
    }
    return
  }
  func.func @transform_0(%arg0: i32, %arg1: i32) -> (i32, i32) {
    %c0_i32 = arith.constant 0 : i32
    %c0_i32_0 = arith.constant 0 : i32
    %c0_i32_1 = arith.constant 0 : i32
    return %c0_i32, %c0_i32_0 : i32, i32
  }
  func.func @transform_1(%arg0: i32, %arg1: i32) -> (i32, i32) {
    %c0_i32 = arith.constant 0 : i32
    return %arg0, %arg1 : i32, i32
  }
  func.func @transform_2(%arg0: i32, %arg1: i32) -> (i32, i32) {
    %c0_i32 = arith.constant 0 : i32
    %c0_i32_0 = arith.constant 0 : i32
    %c0_i32_1 = arith.constant 0 : i32
    return %c0_i32, %c0_i32_0 : i32, i32
  }
  func.func @transform_3(%arg0: i32, %arg1: i32) -> (i32, i32) {
    %c0_i32 = arith.constant 0 : i32
    %c0_i32_0 = arith.constant 0 : i32
    %c0_i32_1 = arith.constant 0 : i32
    return %c0_i32, %c0_i32_0 : i32, i32
  }
  func.func @transform_4(%arg0: i32, %arg1: i32) -> (i32, i32) {
    %c0_i32 = arith.constant 0 : i32
    %c0_i32_0 = arith.constant 0 : i32
    return %arg0, %c0_i32 : i32, i32
  }
}

</mosaic_0001>

<llo_original>
// kernel: tpu_custom_call.1
$region0: #{tpu_custom_call.1}
  #allocation0 [shape = 'u32[]', space=smem, size = 0x4, offset = 0x4, fixed_abs, tag = 'smem constant byte address 0x4 - core index']
  #allocation1 [shape = 'u32[144,128]{1,0:T(1,128)}', space=vmem, size = 0x12000, scoped, tag = 'internal scratch']
  #allocation2 [shape = 'f32[8,128]{1,0:T(8,128)}', space=vmem, size = 0x1000, scoped, tag = 'scratch operand']
  #allocation3 [shape = 'f32[1,1]{1,0:T(1,128)S(6)}', space=smem, size = 0x200, scoped, tag = 'scoped memory for tpu_custom_call.1']
  %s0 = inlined_call_operand.<no memory space> [shape: f32[1,1], index: 0, kind: input, shape index: {}]
  %s1 = inlined_call_operand.hbm [shape: f32[16,32], index: 1, kind: input, shape index: {}]
  %s2 = inlined_call_operand.hbm [shape: f32[32,128], index: 2, kind: input, shape index: {}]
  %s3 = inlined_call_operand.vmem [shape: f32[1,128], index: 3, kind: input, shape index: {}]
  %s4 = inlined_call_operand.hbm [shape: f32[16,128], index: 4, kind: output, shape index: {}]
  %s5 = sld [smem:[#allocation0]]
  $region65: #{tpu_custom_call.1} parent=0
    _
  %s7 = ssub.s32 1, %s5
  %s8 = scalar_select 0, %s7, %s5
  %9 = sst [smem:[#allocation3]] %s0
  $region1: #{tpu_custom_call.1} parent=0
    #allocation4 [shape = 'u8[8192]{0}', space=vmem, size = 0x2000, scoped, tag = 'input window, operand 1']
    #allocation5 [shape = 's32[2]{0}', space=sflag, size = 0x8, scoped, tag = 'scoped memory for tpu_custom_call.1']
    #allocation6 [shape = 's32[2]{0}', space=sflag, size = 0x8, scoped, tag = 'scoped memory for tpu_custom_call.1']
    #allocation7 [shape = 'u8[16384]{0}', space=vmem, size = 0x4000, scoped, tag = 'input window, operand 2, single buffered']
    #allocation8 [shape = 's32[1]{0}', space=sflag, size = 0x4, scoped, tag = 'scoped memory for tpu_custom_call.1']
    #allocation9 [shape = 'u8[8192]{0}', space=vmem, size = 0x2000, scoped, tag = 'output window, operand 0']
    %10 = vsyncpa [#allocation5], 0
    %s11 = scalar_lea.sflag [#allocation5], 1
    %12 = vsyncpa %s11, 0
    %13 = vsyncpa [#allocation8], 0
    %14 = vsyncpa [#allocation6], 0
    %s15 = scalar_lea.sflag [#allocation6], 1
    %16 = vsyncpa %s15, 0
    loop: start=0, step=1, limit=4
    $region2: #{tpu_custom_call.1} parent=1 // loop_pre_header
      _
    $region3: #{tpu_custom_call.1} parent=1 // loop_header
      %s18 = sphi 0, %s22
      %p19 = scmp.ge.s32.totalorder %s18, 4
      %s25 = sphi 0, %s37
      %s26 = sphi 0, %s33
      %s27 = sphi 0, %s25
      %s28 = sphi 0, %s26
      %s29 = sphi 0, %s27
      %s30 = sphi 0, %s28
      %s38 = sphi 0, %s38
      %s40 = sphi 0, %s38
      %s41 = sphi 0, %s40
      %s55 = sphi 0, %s41
      %s63 = sphi 0, %s65
      %s66 = sphi 0, %s63
      %s67 = sphi 0, %s66
      %s83 = sphi 0, %s67
      %s87 = sphi 0, %s87
      %s89 = sphi 0, %s87
      %s90 = sphi 0, %s89
      %s104 = sphi 0, %s90
      %s108 = sphi 0, %s108
      %s110 = sphi 0, %s108
      %s111 = sphi 0, %s110
      %s125 = sphi 0, %s111
      %s131 = sphi 0, %s133
      %s134 = sphi 0, %s131
      %s135 = sphi 0, %s134
      %s151 = sphi 0, %s135
    $region4: #{tpu_custom_call.1} parent=1 // loop_header_branch
      %21 = sbr.rel (%p19) target = $region8
    $region5: #{tpu_custom_call.1} parent=1 // loop_body
      %s23 = ssub.s32 %s18, 1
      %s24 = ssub.s32 %s18, 2
      %s31 = sadd.s32 1, %s26
      %p32 = scmp.ge.s32.totalorder %s31, 1
      %s33 = scalar_select %p32, 0, %s31
      %s34 = sadd.s32 1, %s25
      %s35 = scalar_select %p32, %s34, %s25
      %p36 = scmp.ge.s32.totalorder %s35, 2
      %s37 = scalar_select %p36, 0, %s35
      %s39 = sadd.s32 %s38, 1
      %p42 = scmp.eq.s32.totalorder %s18, 1
      %p43 = scmp.ne.s32.totalorder %s38, %s40
      %p44 = scmp.eq.s32.totalorder %s18, 0
      %p45 = por %p43, %p44
      %p46 = scmp.ne.s32.totalorder %s38, %s40
      %p47 = scmp.eq.s32.totalorder %s23, 1
      %p48 = por %p46, %p47
      %p49 = scmp.ne.s32.totalorder %s40, %s41
      %p50 = scmp.eq.s32.totalorder %s23, 0
      %p51 = por %p49, %p50
      %p52 = scmp.ne.s32.totalorder %s40, %s41
      %p53 = scmp.eq.s32.totalorder %s24, 1
      %p54 = por %p52, %p53
      %p56 = scmp.ne.s32.totalorder %s41, %s55
      %p57 = scmp.eq.s32.totalorder %s24, 0
      %p58 = por %p56, %p57
      %s59 = ssub.s32 %s25, %s37
      %s60 = ssub.s32 %s26, %s33
      %s61 = sor.u32 %s59, %s60
      %p62 = scmp.eq.s32.totalorder %s61, 0
      %s64 = sadd.s32 %s63, 1
      %s65 = scalar_select %p62, %s63, %s64
      %p68 = pneg %p62
      %p69 = scmp.eq.s32.totalorder %s18, 1
      %p70 = por %p68, %p69
      %p71 = scmp.ne.s32.totalorder %s63, %s66
      %p72 = scmp.eq.s32.totalorder %s18, 0
      %p73 = por %p71, %p72
      %p74 = scmp.ne.s32.totalorder %s63, %s66
      %p75 = scmp.eq.s32.totalorder %s23, 1
      %p76 = por %p74, %p75
      %p77 = scmp.ne.s32.totalorder %s66, %s67
      %p78 = scmp.eq.s32.totalorder %s23, 0
      %p79 = por %p77, %p78
      %p80 = scmp.ne.s32.totalorder %s66, %s67
      %p81 = scmp.eq.s32.totalorder %s24, 1
      %p82 = por %p80, %p81
      %p84 = scmp.ne.s32.totalorder %s67, %s83
      %p85 = scmp.eq.s32.totalorder %s24, 0
      %p86 = por %p84, %p85
      %s88 = sadd.s32 %s87, 1
      %p91 = scmp.eq.s32.totalorder %s18, 1
      %p92 = scmp.ne.s32.totalorder %s87, %s89
      %p93 = scmp.eq.s32.totalorder %s18, 0
      %p94 = por %p92, %p93
      %p95 = scmp.ne.s32.totalorder %s87, %s89
      %p96 = scmp.eq.s32.totalorder %s23, 1
      %p97 = por %p95, %p96
      %p98 = scmp.ne.s32.totalorder %s89, %s90
      %p99 = scmp.eq.s32.totalorder %s23, 0
      %p100 = por %p98, %p99
      %p101 = scmp.ne.s32.totalorder %s89, %s90
      %p102 = scmp.eq.s32.totalorder %s24, 1
      %p103 = por %p101, %p102
      %p105 = scmp.ne.s32.totalorder %s90, %s104
      %p106 = scmp.eq.s32.totalorder %s24, 0
      %p107 = por %p105, %p106
      %s109 = sadd.s32 %s108, 1
      %p112 = scmp.eq.s32.totalorder %s18, 1
      %p113 = scmp.ne.s32.totalorder %s108, %s110
      %p114 = scmp.eq.s32.totalorder %s18, 0
      %p115 = por %p113, %p114
      %p116 = scmp.ne.s32.totalorder %s108, %s110
      %p117 = scmp.eq.s32.totalorder %s23, 1
      %p118 = por %p116, %p117
      %p119 = scmp.ne.s32.totalorder %s110, %s111
      %p120 = scmp.eq.s32.totalorder %s23, 0
      %p121 = por %p119, %p120
      %p122 = scmp.ne.s32.totalorder %s110, %s111
      %p123 = scmp.eq.s32.totalorder %s24, 1
      %p124 = por %p122, %p123
      %p126 = scmp.ne.s32.totalorder %s111, %s125
      %p127 = scmp.eq.s32.totalorder %s24, 0
      %p128 = por %p126, %p127
      %s129 = ssub.s32 %s25, %s37
      %p130 = scmp.eq.s32.totalorder %s129, 0
      %s132 = sadd.s32 %s131, 1
      %s133 = scalar_select %p130, %s131, %s132
      %p136 = pneg %p130
      %p137 = scmp.eq.s32.totalorder %s18, 1
      %p138 = por %p136, %p137
      %p139 = scmp.ne.s32.totalorder %s131, %s134
      %p140 = scmp.eq.s32.totalorder %s18, 0
      %p141 = por %p139, %p140
      %p142 = scmp.ne.s32.totalorder %s131, %s134
      %p143 = scmp.eq.s32.totalorder %s23, 1
      %p144 = por %p142, %p143
      %p145 = scmp.ne.s32.totalorder %s134, %s135
      %p146 = scmp.eq.s32.totalorder %s23, 0
      %p147 = por %p145, %p146
      %p148 = scmp.ne.s32.totalorder %s134, %s135
      %p149 = scmp.eq.s32.totalorder %s24, 1
      %p150 = por %p148, %p149
      %p152 = scmp.ne.s32.totalorder %s135, %s151
      %p153 = scmp.eq.s32.totalorder %s24, 0
      %p154 = por %p152, %p153
      %p155 = scmp.le.s32.totalorder 1, %s18
      %p156 = scmp.lt.s32.totalorder %s18, 3
      %p157 = pnand %p155, %p156
      %p158 = pneg %p157
      // Predicated region
      $region9: #{tpu_custom_call.1} parent=5 // pred_check
        _
      $region10: #{tpu_custom_call.1} parent=5 // pred_check_branch
        %160 = sbr.rel (%p157) target = $region12
      $region11: #{tpu_custom_call.1} parent=5 // pred_region
        %s161 = ssub.s32 %s18, 1
        // Predicated region
        $region13: #{tpu_custom_call.1} parent=11 // pred_check
          %p162 = pneg %p51
        $region14: #{tpu_custom_call.1} parent=11 // pred_check_branch
          %164 = sbr.rel (%p162) target = $region16
        $region15: #{tpu_custom_call.1} parent=11 // pred_region
          _
        $region16: #{tpu_custom_call.1} parent=11 // pred_fallthru
          _
        // Predicated region
        $region17: #{tpu_custom_call.1} parent=11 // pred_check
          %p165 = pneg %p100
        $region18: #{tpu_custom_call.1} parent=11 // pred_check_branch
          %167 = sbr.rel (%p165) target = $region20
        $region19: #{tpu_custom_call.1} parent=11 // pred_region
          %s169 = ssub.s32 512, 512
          %170 = vsyncadd [#allocation8], %s169
          %s171 = sshll.u32 [#allocation7], 4
          %s172 = int_to_ptr.vmem [resolvable:$true] %s171
          %177 = dma.hbm_to_vmem [thread:$0]  %s2, 512, %s172, [#allocation8], 128, 128, 8
        $region20: #{tpu_custom_call.1} parent=11 // pred_fallthru
          _
        // Predicated region
        $region21: #{tpu_custom_call.1} parent=11 // pred_check
          %p178 = pneg %p121
        $region22: #{tpu_custom_call.1} parent=11 // pred_check_branch
          %180 = sbr.rel (%p178) target = $region24
        $region23: #{tpu_custom_call.1} parent=11 // pred_region
          _
        $region24: #{tpu_custom_call.1} parent=11 // pred_fallthru
          _
      $region12: #{tpu_custom_call.1} parent=5 // pred_fallthru
        _
      %p181 = scmp.lt.s32.totalorder %s18, 2
      // Predicated region
      $region25: #{tpu_custom_call.1} parent=5 // pred_check
        %p182 = pneg %p181
      $region26: #{tpu_custom_call.1} parent=5 // pred_check_branch
        %184 = sbr.rel (%p182) target = $region28
      $region27: #{tpu_custom_call.1} parent=5 // pred_region
        // Predicated region
        $region29: #{tpu_custom_call.1} parent=27 // pred_check
          %p185 = pneg %p73
        $region30: #{tpu_custom_call.1} parent=27 // pred_check_branch
          %187 = sbr.rel (%p185) target = $region32
        $region31: #{tpu_custom_call.1} parent=27 // pred_region
          %s188 = sand.u32 %s63, 1
          %s189 = scalar_lea.sflag [#allocation5], %s188
          %s190 = sand.u32 %s63, 1
          %s191 = smul.addr %s190, 8
          %s192 = scalar_lea.vmem [#allocation4], %s191
          %s194 = ssub.s32 128, 128
          %195 = vsyncadd %s189, %s194
          %s196 = sadd.s32 %s26, %s25
          %s197 = smul.addr %s196, 128
          %s198 = scalar_lea.hbm %s1, %s197
          %s200 = sshll.u32 %s192, 4
          %s201 = int_to_ptr.vmem [resolvable:$true] %s200
          %203 = dma.hbm_to_vmem [thread:$0]  %s198, 128, %s201, %s189
        $region32: #{tpu_custom_call.1} parent=27 // pred_fallthru
          _
      $region28: #{tpu_custom_call.1} parent=5 // pred_fallthru
        _
      %p204 = scmp.le.s32.totalorder 1, %s18
      %p205 = scmp.lt.s32.totalorder %s18, 3
      %p206 = pnand %p204, %p205
      %p207 = pneg %p206
      // Predicated region
      $region33: #{tpu_custom_call.1} parent=5 // pred_check
        _
      $region34: #{tpu_custom_call.1} parent=5 // pred_check_branch
        %209 = sbr.rel (%p206) target = $region36
      $region35: #{tpu_custom_call.1} parent=5 // pred_region
        %s210 = ssub.s32 %s18, 1
        %s211 = sand.u32 %s66, 1
        %s212 = scalar_lea.sflag [#allocation5], %s211
        %s213 = sand.u32 %s66, 1
        %s214 = smul.addr %s213, 8
        %s215 = scalar_lea.vmem [#allocation4], %s214
        // Predicated region
        $region37: #{tpu_custom_call.1} parent=35 // pred_check
          %p216 = pneg %p79
        $region38: #{tpu_custom_call.1} parent=35 // pred_check_branch
          %218 = sbr.rel (%p216) target = $region40
        $region39: #{tpu_custom_call.1} parent=35 // pred_region
          %219 = dma.done %s212, 128
        $region40: #{tpu_custom_call.1} parent=35 // pred_fallthru
          _
        // Predicated region
        $region41: #{tpu_custom_call.1} parent=35 // pred_check
          %p220 = pneg %p100
        $region42: #{tpu_custom_call.1} parent=35 // pred_check_branch
          %222 = sbr.rel (%p220) target = $region44
        $region43: #{tpu_custom_call.1} parent=35 // pred_region
          %223 = dma.done [#allocation8], 512
        $region44: #{tpu_custom_call.1} parent=35 // pred_fallthru
          _
        %p224 = pneg %p51
        %p225 = pneg %p48
        %s226 = sand.u32 %s66, 1
        %s227 = scalar_lea.sflag [#allocation5], %s226
        %s228 = sand.u32 %s66, 1
        %s229 = smul.addr %s228, 8
        %s230 = scalar_lea.vmem [#allocation4], %s229
        %p231 = pneg %p79
        %p232 = pneg %p76
        %p233 = pneg %p100
        %p234 = pneg %p97
        %p235 = pneg %p121
        %p236 = pneg %p118
        %p237 = pneg %p147
        %p238 = pneg %p144
        %s239 = sand.u32 %s134, 1
        %s240 = scalar_lea.sflag [#allocation6], %s239
        %s241 = sand.u32 %s134, 1
        %s242 = smul.addr %s241, 8
        %s243 = scalar_lea.vmem [#allocation9], %s242
        %p244 = scmp.eq.s32.totalorder %s28, 0
        // Predicated region
        $region45: #{tpu_custom_call.1} parent=35 // pred_check
          %p245 = pneg %p244
        $region46: #{tpu_custom_call.1} parent=35 // pred_check_branch
          %247 = sbr.rel (%p245) target = $region48
        $region47: #{tpu_custom_call.1} parent=35 // pred_region
          %248 = vst [vmem:[#allocation2] sm:$0xff] 0.0
        $region48: #{tpu_custom_call.1} parent=35 // pred_fallthru
          _
        %v249 = vld [vmem:[#allocation2] sm:$0xff]
        %v250 = vld [vmem:[%s215] sm:$0xff]
        %v251 = vld [vmem:[#allocation7] sm:$0xff]
        %v252 = vld [vmem:[#allocation7 + $0x8] sm:$0xff]
        %v253 = vld [vmem:[#allocation7 + $0x10] sm:$0xff]
        %v254 = vld [vmem:[#allocation7 + $0x18] sm:$0xff]
        %vm255 = vcmask 261120
        %v257 = vsel %vm255, %v250, 0
        %259 = vmatprep.subr.mxu0 0.0
        %260 = vmatpush1.msra.mxu0 0.0
        %261 = vmatprep.subr.mxu0 0.0
        %262 = vmatpush1.msra.mxu0 0.0
        %263 = vmatprep.subr.mxu0 0.0
        %264 = vmatpush1.msra.mxu0 0.0
        %265 = vmatprep.subr.mxu0 0.0
        %266 = vmatpush1.msra.mxu0 0.0
        %267 = vmatprep.subr.mxu0 0.0
        %268 = vmatpush1.msra.mxu0 0.0
        %269 = vmatprep.subr.mxu0 0.0
        %270 = vmatpush1.msra.mxu0 0.0
        %271 = vmatprep.subr.mxu0 0.0
        %272 = vmatpush1.msra.mxu0 0.0
        %273 = vmatprep.subr.mxu0 0.0
        %274 = vmatpush1.msra.mxu0 0.0
        %275 = vmatprep.subr.mxu0 0.0
        %276 = vmatpush1.msra.mxu0 0.0
        %277 = vmatprep.subr.mxu0 0.0
        %278 = vmatpush1.msra.mxu0 0.0
        %279 = vmatprep.subr.mxu0 0.0
        %280 = vmatpush1.msra.mxu0 0.0
        %281 = vmatprep.subr.mxu0 0.0
        %282 = vmatpush1.msra.mxu0 0.0
        %283 = vmatprep.subr.mxu0 0.0
        %284 = vmatpush1.msra.mxu0 %v254
        %285 = vmatprep.subr.mxu0 0.0
        %286 = vmatpush1.msra.mxu0 %v253
        %287 = vmatprep.subr.mxu0 0.0
        %288 = vmatpush1.msra.mxu0 %v252
        %289 = vmatprep.subr.mxu0 0.0
        %290 = vmatpush1.msra.mxu0 %v251
        %291 = vmatprep.subr.mxu0 0.0
        %292 = vmatpush2.msra.mxu0 0.0
        %293 = vmatprep.subr.mxu0 0.0
        %294 = vmatpush2.msra.mxu0 0.0
        %295 = vmatprep.subr.mxu0 0.0
        %296 = vmatpush2.msra.mxu0 0.0
        %297 = vmatprep.subr.mxu0 0.0
        %298 = vmatpush2.msra.mxu0 0.0
        %299 = vmatprep.subr.mxu0 0.0
        %300 = vmatpush2.msra.mxu0 0.0
        %301 = vmatprep.subr.mxu0 0.0
        %302 = vmatpush2.msra.mxu0 0.0
        %303 = vmatprep.subr.mxu0 0.0
        %304 = vmatpush2.msra.mxu0 0.0
        %305 = vmatprep.subr.mxu0 0.0
        %306 = vmatpush2.msra.mxu0 0.0
        %307 = vmatprep.subr.mxu0 0.0
        %308 = vmatpush2.msra.mxu0 0.0
        %309 = vmatprep.subr.mxu0 0.0
        %310 = vmatpush2.msra.mxu0 0.0
        %311 = vmatprep.subr.mxu0 0.0
        %312 = vmatpush2.msra.mxu0 0.0
        %313 = vmatprep.subr.mxu0 0.0
        %314 = vmatpush2.msra.mxu0 0.0
        %315 = vmatprep.subr.mxu0 0.0
        %316 = vmatpush2.msra.mxu0 0.0
        %317 = vmatprep.subr.mxu0 0.0
        %318 = vmatpush2.msra.mxu0 0.0
        %319 = vmatprep.subr.mxu0 0.0
        %320 = vmatpush2.msra.mxu0 0.0
        %321 = vmatprep.subr.mxu0 0.0
        %322 = vmatpush2.msra.mxu0 0.0
        %323 = vmatprep.mubr.f32.mxu0 0.0
        %324 = vmatmul.mubr.f32.gmra.mxu0 %v257
        %v325 = vpop.f32.mrf.mxu0
        %v326 = vadd.f32 0.0, %v325
        %v327 = vpop.f32.mrf.mxu0
        %328 = vdwg.mxu0
        %v329 = vadd.f32 %v249, %v326
        %330 = vst [vmem:[#allocation2] sm:$0xff] %v329
        // Predicated region
        $region49: #{tpu_custom_call.1} parent=35 // pred_check
          %p331 = pneg %p244
        $region50: #{tpu_custom_call.1} parent=35 // pred_check_branch
          %333 = sbr.rel (%p331) target = $region52
        $region51: #{tpu_custom_call.1} parent=35 // pred_region
          %v334 = vld [vmem:[#allocation2] sm:$0xff]
          %s335 = sld [smem:[#allocation3]]
          %v336 = vstv %s335
          %v337 = vmul.f32 %v334, %v336
          %v338 = vld [vmem:[%s3] sm:$0x1]
          %v340 = vlaneseq
          %v341 = vshrl.u32 %v340, 7
          %v342 = vsub.s32 0, %v341
          %v343 = vrot.slane %v338, %v342
          %v345 = vadd.f32 %v337, %v343
          %v346 = vmul.f32 %v345, %v345
          %347 = vadd.xlane.f32.xlu0 %v346
          %v348 = vpop.xlane.xlu0 %347
          %v349 = vrsqrt.pop %v348
          %v350 = vmul.f32 %v348, %v349
          %vm351 = vcmp.eq.f32.partialorder %v348, inf
          %v352 = vsel %vm351, %v348, %v350
          %vm353 = vcmp.eq.f32.partialorder %v348, 0.0
          %v354 = vand.u32 %v348, 2147483648
          %v355 = vsel %vm353, %v354, %v352
          %v356 = vadd.f32 %v355, 1e-08
          %v357 = vrcp.pop %v356
          %v358 = vmul.f32 %v345, %v357
          %359 = vst [vmem:[%s243] sm:$0xff] %v358
        $region52: #{tpu_custom_call.1} parent=35 // pred_fallthru
          _
        %s360 = sand.u32 %s134, 1
        %s361 = scalar_lea.sflag [#allocation6], %s360
        %s362 = sand.u32 %s134, 1
        %s363 = smul.addr %s362, 8
        %s364 = scalar_lea.vmem [#allocation9], %s363
        // Predicated region
        $region53: #{tpu_custom_call.1} parent=35 // pred_check
          %p365 = pneg %p144
        $region54: #{tpu_custom_call.1} parent=35 // pred_check_branch
          %367 = sbr.rel (%p365) target = $region56
        $region55: #{tpu_custom_call.1} parent=35 // pred_region
          %s369 = ssub.s32 128, 128
          %370 = vsyncadd %s361, %s369
          %s371 = smul.addr %s27, 128
          %s372 = scalar_lea.hbm %s4, %s371
          %s374 = sshll.u32 %s364, 4
          %s375 = int_to_ptr.vmem [resolvable:$true] %s374
          %377 = dma.vmem_to_hbm [thread:$0]  %s375, 128, %s372, %s361
        $region56: #{tpu_custom_call.1} parent=35 // pred_fallthru
          _
      $region36: #{tpu_custom_call.1} parent=5 // pred_fallthru
        _
      %p378 = scmp.le.s32.totalorder 2, %s18
      // Predicated region
      $region57: #{tpu_custom_call.1} parent=5 // pred_check
        %p379 = pneg %p378
      $region58: #{tpu_custom_call.1} parent=5 // pred_check_branch
        %381 = sbr.rel (%p379) target = $region60
      $region59: #{tpu_custom_call.1} parent=5 // pred_region
        %s382 = ssub.s32 %s18, 2
        // Predicated region
        $region61: #{tpu_custom_call.1} parent=59 // pred_check
          %p383 = pneg %p150
        $region62: #{tpu_custom_call.1} parent=59 // pred_check_branch
          %385 = sbr.rel (%p383) target = $region64
        $region63: #{tpu_custom_call.1} parent=59 // pred_region
          %s386 = sand.u32 %s135, 1
          %s387 = scalar_lea.sflag [#allocation6], %s386
          %s388 = sand.u32 %s135, 1
          %s389 = smul.addr %s388, 8
          %s390 = scalar_lea.vmem [#allocation9], %s389
          %391 = dma.done %s387, 128
        $region64: #{tpu_custom_call.1} parent=59 // pred_fallthru
          _
      $region60: #{tpu_custom_call.1} parent=5 // pred_fallthru
        _
    $region6: #{tpu_custom_call.1} parent=1 // loop_footer
      %s22 = sadd.s32 1, %s18
    $region7: #{tpu_custom_call.1} parent=1 // loop_footer_branch
      %17 = sbr.rel target = $region3
    $region8: #{tpu_custom_call.1} parent=1 // loop_exit
      _
    %392 = vsyncpa [#allocation5], 1
    %s393 = scalar_lea.sflag [#allocation5], 1
    %394 = vsyncpa %s393, 1
    %395 = vsyncpa [#allocation8], 1
    %396 = vsyncpa [#allocation6], 1
    %s397 = scalar_lea.sflag [#allocation6], 1
    %398 = vsyncpa %s397, 1

// kernel: tpu_custom_call.1
$region0: #{tpu_custom_call.1}
  #allocation0 [shape = 'u32[]', space=smem, size = 0x4, offset = 0x4, fixed_abs, tag = 'smem constant byte address 0x4 - core index']
  #allocation1 [shape = 'u32[144,128]{1,0:T(1,128)}', space=vmem, size = 0x12000, scoped, tag = 'internal scratch']
  #allocation2 [shape = 'f32[8,128]{1,0:T(8,128)}', space=vmem, size = 0x1000, scoped, tag = 'scratch operand']
  #allocation3 [shape = 'f32[1,1]{1,0:T(1,128)S(6)}', space=smem, size = 0x200, scoped, tag = 'scoped memory for tpu_custom_call.1']
  %s0 = inlined_call_operand.<no memory space> [shape: f32[1,1], index: 0, kind: input, shape index: {}]
  %s1 = inlined_call_operand.hbm [shape: f32[16,32], index: 1, kind: input, shape index: {}]
  %s2 = inlined_call_operand.hbm [shape: f32[32,128], index: 2, kind: input, shape index: {}]
  %s3 = inlined_call_operand.vmem [shape: f32[1,128], index: 3, kind: input, shape index: {}]
  %s4 = inlined_call_operand.hbm [shape: f32[16,128], index: 4, kind: output, shape index: {}]
  %s5 = sld [smem:[#allocation0]]
  $region65: #{tpu_custom_call.1} parent=0
    _
  %s7 = ssub.s32 1, %s5
  %s8 = scalar_select 0, %s7, %s5
  %9 = sst [smem:[#allocation3]] %s0
  $region1: #{tpu_custom_call.1} parent=0
    #allocation4 [shape = 'u8[8192]{0}', space=vmem, size = 0x2000, scoped, tag = 'input window, operand 1']
    #allocation5 [shape = 's32[2]{0}', space=sflag, size = 0x8, scoped, tag = 'scoped memory for tpu_custom_call.1']
    #allocation6 [shape = 's32[2]{0}', space=sflag, size = 0x8, scoped, tag = 'scoped memory for tpu_custom_call.1']
    #allocation7 [shape = 'u8[16384]{0}', space=vmem, size = 0x4000, scoped, tag = 'input window, operand 2, single buffered']
    #allocation8 [shape = 's32[1]{0}', space=sflag, size = 0x4, scoped, tag = 'scoped memory for tpu_custom_call.1']
    #allocation9 [shape = 'u8[8192]{0}', space=vmem, size = 0x2000, scoped, tag = 'output window, operand 0']
    %10 = vsyncpa [#allocation5], 0
    %s11 = scalar_lea.sflag [#allocation5], 1
    %12 = vsyncpa %s11, 0
    %13 = vsyncpa [#allocation8], 0
    %14 = vsyncpa [#allocation6], 0
    %s15 = scalar_lea.sflag [#allocation6], 1
    %16 = vsyncpa %s15, 0
    loop: start=0, step=1, limit=4
    $region2: #{tpu_custom_call.1} parent=1 // loop_pre_header
      _
    $region3: #{tpu_custom_call.1} parent=1 // loop_header
      %s18 = sphi 0, %s22
      %p19 = scmp.ge.s32.totalorder %s18, 4
      %s25 = sphi 0, %s37
      %s26 = sphi 0, %s33
      %s27 = sphi 0, %s25
      %s28 = sphi 0, %s26
      %s29 = sphi 0, %s27
      %s30 = sphi 0, %s28
      %s38 = sphi 0, %s38
      %s40 = sphi 0, %s38
      %s41 = sphi 0, %s40
      %s55 = sphi 0, %s41
      %s63 = sphi 0, %s65
      %s66 = sphi 0, %s63
      %s67 = sphi 0, %s66
      %s83 = sphi 0, %s67
      %s87 = sphi 0, %s87
      %s89 = sphi 0, %s87
      %s90 = sphi 0, %s89
      %s104 = sphi 0, %s90
      %s108 = sphi 0, %s108
      %s110 = sphi 0, %s108
      %s111 = sphi 0, %s110
      %s125 = sphi 0, %s111
      %s131 = sphi 0, %s133
      %s134 = sphi 0, %s131
      %s135 = sphi 0, %s134
      %s151 = sphi 0, %s135
    $region4: #{tpu_custom_call.1} parent=1 // loop_header_branch
      %21 = sbr.rel (%p19) target = $region8
    $region5: #{tpu_custom_call.1} parent=1 // loop_body
      %s23 = ssub.s32 %s18, 1
      %s24 = ssub.s32 %s18, 2
      %s31 = sadd.s32 1, %s26
      %p32 = scmp.ge.s32.totalorder %s31, 1
      %s33 = scalar_select %p32, 0, %s31
      %s34 = sadd.s32 1, %s25
      %s35 = scalar_select %p32, %s34, %s25
      %p36 = scmp.ge.s32.totalorder %s35, 2
      %s37 = scalar_select %p36, 0, %s35
      %s39 = sadd.s32 %s38, 1
      %p42 = scmp.eq.s32.totalorder %s18, 1
      %p43 = scmp.ne.s32.totalorder %s38, %s40
      %p44 = scmp.eq.s32.totalorder %s18, 0
      %p45 = por %p43, %p44
      %p46 = scmp.ne.s32.totalorder %s38, %s40
      %p47 = scmp.eq.s32.totalorder %s23, 1
      %p48 = por %p46, %p47
      %p49 = scmp.ne.s32.totalorder %s40, %s41
      %p50 = scmp.eq.s32.totalorder %s23, 0
      %p51 = por %p49, %p50
      %p52 = scmp.ne.s32.totalorder %s40, %s41
      %p53 = scmp.eq.s32.totalorder %s24, 1
      %p54 = por %p52, %p53
      %p56 = scmp.ne.s32.totalorder %s41, %s55
      %p57 = scmp.eq.s32.totalorder %s24, 0
      %p58 = por %p56, %p57
      %s59 = ssub.s32 %s25, %s37
      %s60 = ssub.s32 %s26, %s33
      %s61 = sor.u32 %s59, %s60
      %p62 = scmp.eq.s32.totalorder %s61, 0
      %s64 = sadd.s32 %s63, 1
      %s65 = scalar_select %p62, %s63, %s64
      %p68 = pneg %p62
      %p69 = scmp.eq.s32.totalorder %s18, 1
      %p70 = por %p68, %p69
      %p71 = scmp.ne.s32.totalorder %s63, %s66
      %p72 = scmp.eq.s32.totalorder %s18, 0
      %p73 = por %p71, %p72
      %p74 = scmp.ne.s32.totalorder %s63, %s66
      %p75 = scmp.eq.s32.totalorder %s23, 1
      %p76 = por %p74, %p75
      %p77 = scmp.ne.s32.totalorder %s66, %s67
      %p78 = scmp.eq.s32.totalorder %s23, 0
      %p79 = por %p77, %p78
      %p80 = scmp.ne.s32.totalorder %s66, %s67
      %p81 = scmp.eq.s32.totalorder %s24, 1
      %p82 = por %p80, %p81
      %p84 = scmp.ne.s32.totalorder %s67, %s83
      %p85 = scmp.eq.s32.totalorder %s24, 0
      %p86 = por %p84, %p85
      %s88 = sadd.s32 %s87, 1
      %p91 = scmp.eq.s32.totalorder %s18, 1
      %p92 = scmp.ne.s32.totalorder %s87, %s89
      %p93 = scmp.eq.s32.totalorder %s18, 0
      %p94 = por %p92, %p93
      %p95 = scmp.ne.s32.totalorder %s87, %s89
      %p96 = scmp.eq.s32.totalorder %s23, 1
      %p97 = por %p95, %p96
      %p98 = scmp.ne.s32.totalorder %s89, %s90
      %p99 = scmp.eq.s32.totalorder %s23, 0
      %p100 = por %p98, %p99
      %p101 = scmp.ne.s32.totalorder %s89, %s90
      %p102 = scmp.eq.s32.totalorder %s24, 1
      %p103 = por %p101, %p102
      %p105 = scmp.ne.s32.totalorder %s90, %s104
      %p106 = scmp.eq.s32.totalorder %s24, 0
      %p107 = por %p105, %p106
      %s109 = sadd.s32 %s108, 1
      %p112 = scmp.eq.s32.totalorder %s18, 1
      %p113 = scmp.ne.s32.totalorder %s108, %s110
      %p114 = scmp.eq.s32.totalorder %s18, 0
      %p115 = por %p113, %p114
      %p116 = scmp.ne.s32.totalorder %s108, %s110
      %p117 = scmp.eq.s32.totalorder %s23, 1
      %p118 = por %p116, %p117
      %p119 = scmp.ne.s32.totalorder %s110, %s111
      %p120 = scmp.eq.s32.totalorder %s23, 0
      %p121 = por %p119, %p120
      %p122 = scmp.ne.s32.totalorder %s110, %s111
      %p123 = scmp.eq.s32.totalorder %s24, 1
      %p124 = por %p122, %p123
      %p126 = scmp.ne.s32.totalorder %s111, %s125
      %p127 = scmp.eq.s32.totalorder %s24, 0
      %p128 = por %p126, %p127
      %s129 = ssub.s32 %s25, %s37
      %p130 = scmp.eq.s32.totalorder %s129, 0
      %s132 = sadd.s32 %s131, 1
      %s133 = scalar_select %p130, %s131, %s132
      %p136 = pneg %p130
      %p137 = scmp.eq.s32.totalorder %s18, 1
      %p138 = por %p136, %p137
      %p139 = scmp.ne.s32.totalorder %s131, %s134
      %p140 = scmp.eq.s32.totalorder %s18, 0
      %p141 = por %p139, %p140
      %p142 = scmp.ne.s32.totalorder %s131, %s134
      %p143 = scmp.eq.s32.totalorder %s23, 1
      %p144 = por %p142, %p143
      %p145 = scmp.ne.s32.totalorder %s134, %s135
      %p146 = scmp.eq.s32.totalorder %s23, 0
      %p147 = por %p145, %p146
      %p148 = scmp.ne.s32.totalorder %s134, %s135
      %p149 = scmp.eq.s32.totalorder %s24, 1
      %p150 = por %p148, %p149
      %p152 = scmp.ne.s32.totalorder %s135, %s151
      %p153 = scmp.eq.s32.totalorder %s24, 0
      %p154 = por %p152, %p153
      %p155 = scmp.le.s32.totalorder 1, %s18
      %p156 = scmp.lt.s32.totalorder %s18, 3
      %p157 = pnand %p155, %p156
      %p158 = pneg %p157
      // Predicated region
      $region9: #{tpu_custom_call.1} parent=5 // pred_check
        _
      $region10: #{tpu_custom_call.1} parent=5 // pred_check_branch
        %160 = sbr.rel (%p157) target = $region12
      $region11: #{tpu_custom_call.1} parent=5 // pred_region
        %s161 = ssub.s32 %s18, 1
        // Predicated region
        $region13: #{tpu_custom_call.1} parent=11 // pred_check
          %p162 = pneg %p51
        $region14: #{tpu_custom_call.1} parent=11 // pred_check_branch
          %164 = sbr.rel (%p162) target = $region16
        $region15: #{tpu_custom_call.1} parent=11 // pred_region
          _
        $region16: #{tpu_custom_call.1} parent=11 // pred_fallthru
          _
        // Predicated region
        $region17: #{tpu_custom_call.1} parent=11 // pred_check
          %p165 = pneg %p100
        $region18: #{tpu_custom_call.1} parent=11 // pred_check_branch
          %167 = sbr.rel (%p165) target = $region20
        $region19: #{tpu_custom_call.1} parent=11 // pred_region
          %s169 = ssub.s32 512, 512
          %170 = vsyncadd [#allocation8], %s169
          %s171 = sshll.u32 [#allocation7], 4
          %s172 = int_to_ptr.vmem [resolvable:$true] %s171
          %177 = dma.hbm_to_vmem [thread:$0]  %s2, 512, %s172, [#allocation8], 128, 128, 8
        $region20: #{tpu_custom_call.1} parent=11 // pred_fallthru
          _
        // Predicated region
        $region21: #{tpu_custom_call.1} parent=11 // pred_check
          %p178 = pneg %p121
        $region22: #{tpu_custom_call.1} parent=11 // pred_check_branch
          %180 = sbr.rel (%p178) target = $region24
        $region23: #{tpu_custom_call.1} parent=11 // pred_region
          _
        $region24: #{tpu_custom_call.1} parent=11 // pred_fallthru
          _
      $region12: #{tpu_custom_call.1} parent=5 // pred_fallthru
        _
      %p181 = scmp.lt.s32.totalorder %s18, 2
      // Predicated region
      $region25: #{tpu_custom_call.1} parent=5 // pred_check
        %p182 = pneg %p181
      $region26: #{tpu_custom_call.1} parent=5 // pred_check_branch
        %184 = sbr.rel (%p182) target = $region28
      $region27: #{tpu_custom_call.1} parent=5 // pred_region
        // Predicated region
        $region29: #{tpu_custom_call.1} parent=27 // pred_check
          %p185 = pneg %p73
        $region30: #{tpu_custom_call.1} parent=27 // pred_check_branch
          %187 = sbr.rel (%p185) target = $region32
        $region31: #{tpu_custom_call.1} parent=27 // pred_region
          %s188 = sand.u32 %s63, 1
          %s189 = scalar_lea.sflag [#allocation5], %s188
          %s190 = sand.u32 %s63, 1
          %s191 = smul.addr %s190, 8
          %s192 = scalar_lea.vmem [#allocation4], %s191
          %s194 = ssub.s32 128, 128
          %195 = vsyncadd %s189, %s194
          %s196 = sadd.s32 %s26, %s25
          %s197 = smul.addr %s196, 128
          %s198 = scalar_lea.hbm %s1, %s197
          %s200 = sshll.u32 %s192, 4
          %s201 = int_to_ptr.vmem [resolvable:$true] %s200
          %203 = dma.hbm_to_vmem [thread:$0]  %s198, 128, %s201, %s189
        $region32: #{tpu_custom_call.1} parent=27 // pred_fallthru
          _
      $region28: #{tpu_custom_call.1} parent=5 // pred_fallthru
        _
      %p204 = scmp.le.s32.totalorder 1, %s18
      %p205 = scmp.lt.s32.totalorder %s18, 3
      %p206 = pnand %p204, %p205
      %p207 = pneg %p206
      // Predicated region
      $region33: #{tpu_custom_call.1} parent=5 // pred_check
        _
      $region34: #{tpu_custom_call.1} parent=5 // pred_check_branch
        %209 = sbr.rel (%p206) target = $region36
      $region35: #{tpu_custom_call.1} parent=5 // pred_region
        %s210 = ssub.s32 %s18, 1
        %s211 = sand.u32 %s66, 1
        %s212 = scalar_lea.sflag [#allocation5], %s211
        %s213 = sand.u32 %s66, 1
        %s214 = smul.addr %s213, 8
        %s215 = scalar_lea.vmem [#allocation4], %s214
        // Predicated region
        $region37: #{tpu_custom_call.1} parent=35 // pred_check
          %p216 = pneg %p79
        $region38: #{tpu_custom_call.1} parent=35 // pred_check_branch
          %218 = sbr.rel (%p216) target = $region40
        $region39: #{tpu_custom_call.1} parent=35 // pred_region
          %219 = dma.done %s212, 128
        $region40: #{tpu_custom_call.1} parent=35 // pred_fallthru
          _
        // Predicated region
        $region41: #{tpu_custom_call.1} parent=35 // pred_check
          %p220 = pneg %p100
        $region42: #{tpu_custom_call.1} parent=35 // pred_check_branch
          %222 = sbr.rel (%p220) target = $region44
        $region43: #{tpu_custom_call.1} parent=35 // pred_region
          %223 = dma.done [#allocation8], 512
        $region44: #{tpu_custom_call.1} parent=35 // pred_fallthru
          _
        %p224 = pneg %p51
        %p225 = pneg %p48
        %s226 = sand.u32 %s66, 1
        %s227 = scalar_lea.sflag [#allocation5], %s226
        %s228 = sand.u32 %s66, 1
        %s229 = smul.addr %s228, 8
        %s230 = scalar_lea.vmem [#allocation4], %s229
        %p231 = pneg %p79
        %p232 = pneg %p76
        %p233 = pneg %p100
        %p234 = pneg %p97
        %p235 = pneg %p121
        %p236 = pneg %p118
        %p237 = pneg %p147
        %p238 = pneg %p144
        %s239 = sand.u32 %s134, 1
        %s240 = scalar_lea.sflag [#allocation6], %s239
        %s241 = sand.u32 %s134, 1
        %s242 = smul.addr %s241, 8
        %s243 = scalar_lea.vmem [#allocation9], %s242
        %p244 = scmp.eq.s32.totalorder %s28, 0
        // Predicated region
        $region45: #{tpu_custom_call.1} parent=35 // pred_check
          %p245 = pneg %p244
        $region46: #{tpu_custom_call.1} parent=35 // pred_check_branch
          %247 = sbr.rel (%p245) target = $region48
        $region47: #{tpu_custom_call.1} parent=35 // pred_region
          %248 = vst [vmem:[#allocation2] sm:$0xff] 0.0
        $region48: #{tpu_custom_call.1} parent=35 // pred_fallthru
          _
        %v249 = vld [vmem:[#allocation2] sm:$0xff]
        %v250 = vld [vmem:[%s215] sm:$0xff]
        %v251 = vld [vmem:[#allocation7] sm:$0xff]
        %v252 = vld [vmem:[#allocation7 + $0x8] sm:$0xff]
        %v253 = vld [vmem:[#allocation7 + $0x10] sm:$0xff]
        %v254 = vld [vmem:[#allocation7 + $0x18] sm:$0xff]
        %vm255 = vcmask 261120
        %v257 = vsel %vm255, %v250, 0
        %259 = vmatprep.subr.mxu0 0.0
        %260 = vmatpush1.msra.mxu0 0.0
        %261 = vmatprep.subr.mxu0 0.0
        %262 = vmatpush1.msra.mxu0 0.0
        %263 = vmatprep.subr.mxu0 0.0
        %264 = vmatpush1.msra.mxu0 0.0
        %265 = vmatprep.subr.mxu0 0.0
        %266 = vmatpush1.msra.mxu0 0.0
        %267 = vmatprep.subr.mxu0 0.0
        %268 = vmatpush1.msra.mxu0 0.0
        %269 = vmatprep.subr.mxu0 0.0
        %270 = vmatpush1.msra.mxu0 0.0
        %271 = vmatprep.subr.mxu0 0.0
        %272 = vmatpush1.msra.mxu0 0.0
        %273 = vmatprep.subr.mxu0 0.0
        %274 = vmatpush1.msra.mxu0 0.0
        %275 = vmatprep.subr.mxu0 0.0
        %276 = vmatpush1.msra.mxu0 0.0
        %277 = vmatprep.subr.mxu0 0.0
        %278 = vmatpush1.msra.mxu0 0.0
        %279 = vmatprep.subr.mxu0 0.0
        %280 = vmatpush1.msra.mxu0 0.0
        %281 = vmatprep.subr.mxu0 0.0
        %282 = vmatpush1.msra.mxu0 0.0
        %283 = vmatprep.subr.mxu0 0.0
        %284 = vmatpush1.msra.mxu0 %v254
        %285 = vmatprep.subr.mxu0 0.0
        %286 = vmatpush1.msra.mxu0 %v253
        %287 = vmatprep.subr.mxu0 0.0
        %288 = vmatpush1.msra.mxu0 %v252
        %289 = vmatprep.subr.mxu0 0.0
        %290 = vmatpush1.msra.mxu0 %v251
        %291 = vmatprep.subr.mxu0 0.0
        %292 = vmatpush2.msra.mxu0 0.0
        %293 = vmatprep.subr.mxu0 0.0
        %294 = vmatpush2.msra.mxu0 0.0
        %295 = vmatprep.subr.mxu0 0.0
        %296 = vmatpush2.msra.mxu0 0.0
        %297 = vmatprep.subr.mxu0 0.0
        %298 = vmatpush2.msra.mxu0 0.0
        %299 = vmatprep.subr.mxu0 0.0
        %300 = vmatpush2.msra.mxu0 0.0
        %301 = vmatprep.subr.mxu0 0.0
        %302 = vmatpush2.msra.mxu0 0.0
        %303 = vmatprep.subr.mxu0 0.0
        %304 = vmatpush2.msra.mxu0 0.0
        %305 = vmatprep.subr.mxu0 0.0
        %306 = vmatpush2.msra.mxu0 0.0
        %307 = vmatprep.subr.mxu0 0.0
        %308 = vmatpush2.msra.mxu0 0.0
        %309 = vmatprep.subr.mxu0 0.0
        %310 = vmatpush2.msra.mxu0 0.0
        %311 = vmatprep.subr.mxu0 0.0
        %312 = vmatpush2.msra.mxu0 0.0
        %313 = vmatprep.subr.mxu0 0.0
        %314 = vmatpush2.msra.mxu0 0.0
        %315 = vmatprep.subr.mxu0 0.0
        %316 = vmatpush2.msra.mxu0 0.0
        %317 = vmatprep.subr.mxu0 0.0
        %318 = vmatpush2.msra.mxu0 0.0
        %319 = vmatprep.subr.mxu0 0.0
        %320 = vmatpush2.msra.mxu0 0.0
        %321 = vmatprep.subr.mxu0 0.0
        %322 = vmatpush2.msra.mxu0 0.0
        %323 = vmatprep.mubr.f32.mxu0 0.0
        %324 = vmatmul.mubr.f32.gmra.mxu0 %v257
        %v325 = vpop.f32.mrf.mxu0
        %v326 = vadd.f32 0.0, %v325
        %v327 = vpop.f32.mrf.mxu0
        %328 = vdwg.mxu0
        %v329 = vadd.f32 %v249, %v326
        %330 = vst [vmem:[#allocation2] sm:$0xff] %v329
        // Predicated region
        $region49: #{tpu_custom_call.1} parent=35 // pred_check
          %p331 = pneg %p244
        $region50: #{tpu_custom_call.1} parent=35 // pred_check_branch
          %333 = sbr.rel (%p331) target = $region52
        $region51: #{tpu_custom_call.1} parent=35 // pred_region
          %v334 = vld [vmem:[#allocation2] sm:$0xff]
          %s335 = sld [smem:[#allocation3]]
          %v336 = vstv %s335
          %v337 = vmul.f32 %v334, %v336
          %v338 = vld [vmem:[%s3] sm:$0x1]
          %v340 = vlaneseq
          %v341 = vshrl.u32 %v340, 7
          %v342 = vsub.s32 0, %v341
          %v343 = vrot.slane %v338, %v342
          %v345 = vadd.f32 %v337, %v343
          %v346 = vmul.f32 %v345, %v345
          %347 = vadd.xlane.f32.xlu0 %v346
          %v348 = vpop.xlane.xlu0 %347
          %v349 = vrsqrt.pop %v348
          %v350 = vmul.f32 %v348, %v349
          %vm351 = vcmp.eq.f32.partialorder %v348, inf
          %v352 = vsel %vm351, %v348, %v350
          %vm353 = vcmp.eq.f32.partialorder %v348, 0.0
          %v354 = vand.u32 %v348, 2147483648
          %v355 = vsel %vm353, %v354, %v352
          %v356 = vadd.f32 %v355, 1e-08
          %v357 = vrcp.pop %v356
          %v358 = vmul.f32 %v345, %v357
          %359 = vst [vmem:[%s243] sm:$0xff] %v358
        $region52: #{tpu_custom_call.1} parent=35 // pred_fallthru
          _
        %s360 = sand.u32 %s134, 1
        %s361 = scalar_lea.sflag [#allocation6], %s360
        %s362 = sand.u32 %s134, 1
        %s363 = smul.addr %s362, 8
        %s364 = scalar_lea.vmem [#allocation9], %s363
        // Predicated region
        $region53: #{tpu_custom_call.1} parent=35 // pred_check
          %p365 = pneg %p144
        $region54: #{tpu_custom_call.1} parent=35 // pred_check_branch
          %367 = sbr.rel (%p365) target = $region56
        $region55: #{tpu_custom_call.1} parent=35 // pred_region
          %s369 = ssub.s32 128, 128
          %370 = vsyncadd %s361, %s369
          %s371 = smul.addr %s27, 128
          %s372 = scalar_lea.hbm %s4, %s371
          %s374 = sshll.u32 %s364, 4
          %s375 = int_to_ptr.vmem [resolvable:$true] %s374
          %377 = dma.vmem_to_hbm [thread:$0]  %s375, 128, %s372, %s361
        $region56: #{tpu_custom_call.1} parent=35 // pred_fallthru
          _
      $region36: #{tpu_custom_call.1} parent=5 // pred_fallthru
        _
      %p378 = scmp.le.s32.totalorder 2, %s18
      // Predicated region
      $region57: #{tpu_custom_call.1} parent=5 // pred_check
        %p379 = pneg %p378
      $region58: #{tpu_custom_call.1} parent=5 // pred_check_branch
        %381 = sbr.rel (%p379) target = $region60
      $region59: #{tpu_custom_call.1} parent=5 // pred_region
        %s382 = ssub.s32 %s18, 2
        // Predicated region
        $region61: #{tpu_custom_call.1} parent=59 // pred_check
          %p383 = pneg %p150
        $region62: #{tpu_custom_call.1} parent=59 // pred_check_branch
          %385 = sbr.rel (%p383) target = $region64
        $region63: #{tpu_custom_call.1} parent=59 // pred_region
          %s386 = sand.u32 %s135, 1
          %s387 = scalar_lea.sflag [#allocation6], %s386
          %s388 = sand.u32 %s135, 1
          %s389 = smul.addr %s388, 8
          %s390 = scalar_lea.vmem [#allocation9], %s389
          %391 = dma.done %s387, 128
        $region64: #{tpu_custom_call.1} parent=59 // pred_fallthru
          _
      $region60: #{tpu_custom_call.1} parent=5 // pred_fallthru
        _
    $region6: #{tpu_custom_call.1} parent=1 // loop_footer
      %s22 = sadd.s32 1, %s18
    $region7: #{tpu_custom_call.1} parent=1 // loop_footer_branch
      %17 = sbr.rel target = $region3
    $region8: #{tpu_custom_call.1} parent=1 // loop_exit
      _
    %392 = vsyncpa [#allocation5], 1
    %s393 = scalar_lea.sflag [#allocation5], 1
    %394 = vsyncpa %s393, 1
    %395 = vsyncpa [#allocation8], 1
    %396 = vsyncpa [#allocation6], 1
    %s397 = scalar_lea.sflag [#allocation6], 1
    %398 = vsyncpa %s397, 1

</llo_original>
